<compile_context>
chip_gen: v5e
topology: v5e:2x2
jax: 0.10.0
libtpu: 0.0.40
codegen_flags: <defaults>
</compile_context>

<pallas_src>
import jax
import jax.numpy as jnp
from jax.experimental import pallas as pl
from jax.experimental.pallas import tpu as pltpu


def _residual_kernel(x_ref, w_ref, shift_ref, o_ref):
    """One grid step = one lane tile of the flattened (B*F) axis.

    x_ref:     (in_points, TILE_N)   VMEM
    w_ref:     (out_points, in_points)   BN scale already folded in
    shift_ref: (out_points, 1)           folded conv-bias + BN shift
    o_ref:     (out_points, TILE_N)
    """
    # 1x1 Conv1d == channel-mixing matmul on the MXU (f32 accumulation).
    y = jnp.dot(w_ref[...], x_ref[...], preferred_element_type=jnp.float32)
    # Folded BatchNorm (eval mode) shift, then ReLU on the VPU.
    y = y + shift_ref[...]
    o_ref[...] = jnp.maximum(y, 0.0).astype(o_ref.dtype)


def residual_connection(x, conv_w, conv_b, gamma, beta,
                        running_mean, running_var, eps=1e-5,
                        target_tile_n=512):
    """x: (B, in_points, F) float32 -> (B, out_points, F) float32."""
    B, n_in, F = x.shape
    n_out = conv_w.shape[0]

    # --- Fold eval-mode BN + conv bias (plain JAX glue, one-time cost) ------
    inv_std = jax.lax.rsqrt(running_var.astype(jnp.float32) + eps)
    scale = gamma.astype(jnp.float32) * inv_std                      # (n_out,)
    w_fold = scale[:, None] * conv_w.astype(jnp.float32)             # (n_out, n_in)
    shift = ((conv_b.astype(jnp.float32) - running_mean.astype(jnp.float32))
             * scale + beta.astype(jnp.float32)).reshape(n_out, 1)   # (n_out, 1)

    # --- Lane-dense layout: contract in_points, lanes = B*F -----------------
    N = B * F
    x2 = jnp.transpose(x, (1, 0, 2)).reshape(n_in, N).astype(jnp.float32)

    lane = 128
    # Largest lane tile <= target that is a multiple of 128 (or covers all of N).
    tile_n = min(target_tile_n, pl.cdiv(N, lane) * lane)
    n_pad = pl.cdiv(N, tile_n) * tile_n
    if n_pad != N:
        x2 = jnp.pad(x2, ((0, 0), (0, n_pad - N)))

    grid = (n_pad // tile_n,)

    y2 = pl.pallas_call(
        _residual_kernel,
        out_shape=jax.ShapeDtypeStruct((n_out, n_pad), jnp.float32),
        grid_spec=pltpu.PrefetchScalarGridSpec(
            num_scalar_prefetch=0,
            grid=grid,
            in_specs=[
                pl.BlockSpec((n_in, tile_n), lambda j: (0, j)),
                pl.BlockSpec((n_out, n_in), lambda j: (0, 0)),
                pl.BlockSpec((n_out, 1), lambda j: (0, 0)),
            ],
            out_specs=pl.BlockSpec((n_out, tile_n), lambda j: (0, j)),
        ),
        compiler_params=pltpu.CompilerParams(
            dimension_semantics=("parallel",)),
    )(x2, w_fold, shift)

    # Strip padding and restore (B, out_points, F).
    y2 = y2[:, :N].reshape(n_out, B, F)
    return jnp.transpose(y2, (1, 0, 2)).astype(x.dtype)


def _reference(x, conv_w, conv_b, gamma, beta, running_mean, running_var, eps=1e-5):
    # Pure-JAX reference mirroring the PyTorch eval-mode forward.
    y = jnp.einsum("oi,bif->bof", conv_w, x) + conv_b[None, :, None]
    y = (y - running_mean[None, :, None]) * jax.lax.rsqrt(
        running_var[None, :, None] + eps)
    y = y * gamma[None, :, None] + beta[None, :, None]
    return jnp.maximum(y, 0.0)


def _make_params(key, n_in, n_out):
    kw, kb, kg, kbe, km, kv = jax.random.split(key, 6)
    conv_w = jax.random.normal(kw, (n_out, n_in), dtype=jnp.float32) * 0.1
    conv_b = jax.random.normal(kb, (n_out,), dtype=jnp.float32) * 0.1
    gamma = 1.0 + 0.1 * jax.random.normal(kg, (n_out,), dtype=jnp.float32)
    beta = 0.1 * jax.random.normal(kbe, (n_out,), dtype=jnp.float32)
    running_mean = 0.1 * jax.random.normal(km, (n_out,), dtype=jnp.float32)
    running_var = 1.0 + 0.1 * jnp.abs(jax.random.normal(kv, (n_out,), dtype=jnp.float32))
    return conv_w, conv_b, gamma, beta, running_mean, running_var


if __name__ == "__main__":
    key = jax.random.PRNGKey(0)
    k1, k2, kp1, kp2 = jax.random.split(key, 4)

    # Case 1: B*F = 1024 -> two lane tiles of 512 (exercises the parallel axis).
    B, in_points, out_points, feat = 2, 16, 32, 512
    x = jax.random.normal(k1, (B, in_points, feat), dtype=jnp.float32)
    params = _make_params(kp1, in_points, out_points)
    out = jax.block_until_ready(residual_connection(x, *params))
    ref = _reference(x, *params)
    assert out.shape == (B, out_points, feat)
    assert jnp.allclose(out, ref, atol=1e-5, rtol=1e-5)

    # Case 2: ragged lane count (B*F = 288, padded to 384) -> padding path.
    B2, feat2 = 3, 96
    x2 = jax.random.normal(k2, (B2, in_points, feat2), dtype=jnp.float32)
    params2 = _make_params(kp2, in_points, out_points)
    out2 = jax.block_until_ready(residual_connection(x2, *params2))
    ref2 = _reference(x2, *params2)
    assert out2.shape == (B2, out_points, feat2)
    assert jnp.allclose(out2, ref2, atol=1e-5, rtol=1e-5)

    print("KERNEL_OK")
</pallas_src>

<mosaic_0001>
module attributes {stable_mosaic.version = 11 : i64} {
  func.func @_residual_kernel(%arg0: i32, %arg1: memref<16x512xf32, #tpu.memory_space<vmem>>, %arg2: memref<32x16xf32, #tpu.memory_space<vmem>>, %arg3: memref<32x1xf32, #tpu.memory_space<vmem>>, %arg4: memref<32x512xf32, #tpu.memory_space<vmem>>) attributes {dimension_semantics = [#tpu.dimension_semantics<parallel>], iteration_bounds = array<i64: 2>, scalar_prefetch = 0 : i64, scratch_operands = 0 : i64, tpu.core_type = #tpu.core_type<tc>, window_params = [{transform_indices = @transform_0, window_bounds = array<i64: 16, 512>}, {pipeline_mode = #tpu.pipeline_mode<synchronous>, transform_indices = @transform_1, window_bounds = array<i64: 32, 16>}, {pipeline_mode = #tpu.pipeline_mode<synchronous>, transform_indices = @transform_2, window_bounds = array<i64: 32, 1>}, {transform_indices = @transform_3, window_bounds = array<i64: 32, 512>}]} {
    %c0 = arith.constant 0 : index
    %c0_0 = arith.constant 0 : index
    %0 = vector.load %arg2[%c0, %c0_0] : memref<32x16xf32, #tpu.memory_space<vmem>>, vector<32x16xf32>
    %c0_1 = arith.constant 0 : index
    %c0_2 = arith.constant 0 : index
    %1 = vector.load %arg1[%c0_1, %c0_2] : memref<16x512xf32, #tpu.memory_space<vmem>>, vector<16x512xf32>
    %cst = arith.constant dense<0.000000e+00> : vector<32x512xf32>
    %2 = tpu.matmul %0, %1, %cst {dimension_numbers = #tpu.dot_dimension_numbers<[1], [0], [0], [1], [0, 0, 1, 1], [], []>} : vector<32x16xf32>, vector<16x512xf32>, vector<32x512xf32> -> vector<32x512xf32>
    %c0_3 = arith.constant 0 : index
    %c0_4 = arith.constant 0 : index
    %3 = vector.load %arg3[%c0_3, %c0_4] : memref<32x1xf32, #tpu.memory_space<vmem>>, vector<32x1xf32>
    %4 = vector.broadcast %3 : vector<32x1xf32> to vector<32x512xf32>
    %5 = arith.addf %2, %4 : vector<32x512xf32>
    %cst_5 = arith.constant 0.000000e+00 : f32
    %6 = vector.broadcast %cst_5 : f32 to vector<32x512xf32>
    %7 = arith.maximumf %5, %6 : vector<32x512xf32>
    %c0_6 = arith.constant 0 : index
    %c0_7 = arith.constant 0 : index
    %8 = vector.load %arg4[%c0_6, %c0_7] : memref<32x512xf32, #tpu.memory_space<vmem>>, vector<32x512xf32>
    tpu.vector_store %arg4[%c0_6, %c0_7], %7 {strides = array<i32>} : memref<32x512xf32, #tpu.memory_space<vmem>>, vector<32x512xf32>,
    return
  }
  func.func @transform_0(%arg0: i32) -> (i32, i32) {
    %c0_i32 = arith.constant 0 : i32
    %c0_i32_0 = arith.constant 0 : i32
    return %c0_i32, %arg0 : i32, i32
  }
  func.func @transform_1(%arg0: i32) -> (i32, i32) {
    %c0_i32 = arith.constant 0 : i32
    %c0_i32_0 = arith.constant 0 : i32
    %c0_i32_1 = arith.constant 0 : i32
    return %c0_i32, %c0_i32_0 : i32, i32
  }
  func.func @transform_2(%arg0: i32) -> (i32, i32) {
    %c0_i32 = arith.constant 0 : i32
    %c0_i32_0 = arith.constant 0 : i32
    %c0_i32_1 = arith.constant 0 : i32
    return %c0_i32, %c0_i32_0 : i32, i32
  }
  func.func @transform_3(%arg0: i32) -> (i32, i32) {
    %c0_i32 = arith.constant 0 : i32
    %c0_i32_0 = arith.constant 0 : i32
    return %c0_i32, %arg0 : i32, i32
  }
}

</mosaic_0001>

<llo_original>
// kernel: tpu_custom_call.1
$region0: #{tpu_custom_call.1}
  #allocation0 [shape = 'u32[]', space=smem, size = 0x4, offset = 0x4, fixed_abs, tag = 'smem constant byte address 0x4 - core index']
  #allocation1 [shape = 'u32[72,128]{1,0:T(1,128)}', space=vmem, size = 0x9000, scoped, tag = 'internal scratch']
  %s0 = inlined_call_operand.hbm [shape: f32[16,1024], index: 0, kind: input, shape index: {}]
  %s1 = inlined_call_operand.vmem [shape: f32[32,16], index: 1, kind: input, shape index: {}]
  %s2 = inlined_call_operand.vmem [shape: f32[32,1], index: 2, kind: input, shape index: {}]
  %s3 = inlined_call_operand.hbm [shape: f32[32,1024], index: 3, kind: output, shape index: {}]
  %s4 = sld [smem:[#allocation0]]
  $region49: #{tpu_custom_call.1} parent=0
    _
  %s6 = ssub.s32 1, %s4
  %s7 = scalar_select 0, %s6, %s4
  $region1: #{tpu_custom_call.1} parent=0
    #allocation2 [shape = 'u8[65536]{0}', space=vmem, size = 0x10000, scoped, tag = 'input window, operand 0']
    #allocation3 [shape = 's32[2]{0}', space=sflag, size = 0x8, scoped, tag = 'scoped memory for tpu_custom_call.1']
    #allocation4 [shape = 's32[2]{0}', space=sflag, size = 0x8, scoped, tag = 'scoped memory for tpu_custom_call.1']
    #allocation5 [shape = 'u8[131072]{0}', space=vmem, size = 0x20000, scoped, tag = 'output window, operand 0']
    %8 = vsyncpa [#allocation3], 0
    %s9 = scalar_lea.sflag [#allocation3], 1
    %10 = vsyncpa %s9, 0
    %11 = vsyncpa [#allocation4], 0
    %s12 = scalar_lea.sflag [#allocation4], 1
    %13 = vsyncpa %s12, 0
    loop: start=0, step=1, limit=4
    $region2: #{tpu_custom_call.1} parent=1 // loop_pre_header
      _
    $region3: #{tpu_custom_call.1} parent=1 // loop_header
      %s15 = sphi 0, %s19
      %p16 = scmp.ge.s32.totalorder %s15, 4
      %s25 = sphi 0, %s27
      %s28 = sphi 0, %s25
      %s29 = sphi 0, %s28
      %s45 = sphi 0, %s29
      %s49 = sphi 0, %s49
      %s51 = sphi 0, %s49
      %s52 = sphi 0, %s51
      %s66 = sphi 0, %s52
      %s70 = sphi 0, %s70
      %s72 = sphi 0, %s70
      %s73 = sphi 0, %s72
      %s87 = sphi 0, %s73
      %s93 = sphi 0, %s95
      %s96 = sphi 0, %s93
      %s97 = sphi 0, %s96
      %s113 = sphi 0, %s97
    $region4: #{tpu_custom_call.1} parent=1 // loop_header_branch
      %18 = sbr.rel (%p16) target = $region8
    $region5: #{tpu_custom_call.1} parent=1 // loop_body
      %s20 = ssub.s32 %s15, 1
      %s21 = ssub.s32 %s15, 2
      %s22 = sadd.s32 %s15, 1
      %s23 = ssub.s32 %s15, %s22
      %p24 = scmp.eq.s32.totalorder %s23, 0
      %s26 = sadd.s32 %s25, 1
      %s27 = scalar_select %p24, %s25, %s26
      %p30 = pneg %p24
      %p31 = scmp.eq.s32.totalorder %s15, 1
      %p32 = por %p30, %p31
      %p33 = scmp.ne.s32.totalorder %s25, %s28
      %p34 = scmp.eq.s32.totalorder %s15, 0
      %p35 = por %p33, %p34
      %p36 = scmp.ne.s32.totalorder %s25, %s28
      %p37 = scmp.eq.s32.totalorder %s20, 1
      %p38 = por %p36, %p37
      %p39 = scmp.ne.s32.totalorder %s28, %s29
      %p40 = scmp.eq.s32.totalorder %s20, 0
      %p41 = por %p39, %p40
      %p42 = scmp.ne.s32.totalorder %s28, %s29
      %p43 = scmp.eq.s32.totalorder %s21, 1
      %p44 = por %p42, %p43
      %p46 = scmp.ne.s32.totalorder %s29, %s45
      %p47 = scmp.eq.s32.totalorder %s21, 0
      %p48 = por %p46, %p47
      %s50 = sadd.s32 %s49, 1
      %p53 = scmp.eq.s32.totalorder %s15, 1
      %p54 = scmp.ne.s32.totalorder %s49, %s51
      %p55 = scmp.eq.s32.totalorder %s15, 0
      %p56 = por %p54, %p55
      %p57 = scmp.ne.s32.totalorder %s49, %s51
      %p58 = scmp.eq.s32.totalorder %s20, 1
      %p59 = por %p57, %p58
      %p60 = scmp.ne.s32.totalorder %s51, %s52
      %p61 = scmp.eq.s32.totalorder %s20, 0
      %p62 = por %p60, %p61
      %p63 = scmp.ne.s32.totalorder %s51, %s52
      %p64 = scmp.eq.s32.totalorder %s21, 1
      %p65 = por %p63, %p64
      %p67 = scmp.ne.s32.totalorder %s52, %s66
      %p68 = scmp.eq.s32.totalorder %s21, 0
      %p69 = por %p67, %p68
      %s71 = sadd.s32 %s70, 1
      %p74 = scmp.eq.s32.totalorder %s15, 1
      %p75 = scmp.ne.s32.totalorder %s70, %s72
      %p76 = scmp.eq.s32.totalorder %s15, 0
      %p77 = por %p75, %p76
      %p78 = scmp.ne.s32.totalorder %s70, %s72
      %p79 = scmp.eq.s32.totalorder %s20, 1
      %p80 = por %p78, %p79
      %p81 = scmp.ne.s32.totalorder %s72, %s73
      %p82 = scmp.eq.s32.totalorder %s20, 0
      %p83 = por %p81, %p82
      %p84 = scmp.ne.s32.totalorder %s72, %s73
      %p85 = scmp.eq.s32.totalorder %s21, 1
      %p86 = por %p84, %p85
      %p88 = scmp.ne.s32.totalorder %s73, %s87
      %p89 = scmp.eq.s32.totalorder %s21, 0
      %p90 = por %p88, %p89
      %s91 = ssub.s32 %s15, %s22
      %p92 = scmp.eq.s32.totalorder %s91, 0
      %s94 = sadd.s32 %s93, 1
      %s95 = scalar_select %p92, %s93, %s94
      %p98 = pneg %p92
      %p99 = scmp.eq.s32.totalorder %s15, 1
      %p100 = por %p98, %p99
      %p101 = scmp.ne.s32.totalorder %s93, %s96
      %p102 = scmp.eq.s32.totalorder %s15, 0
      %p103 = por %p101, %p102
      %p104 = scmp.ne.s32.totalorder %s93, %s96
      %p105 = scmp.eq.s32.totalorder %s20, 1
      %p106 = por %p104, %p105
      %p107 = scmp.ne.s32.totalorder %s96, %s97
      %p108 = scmp.eq.s32.totalorder %s20, 0
      %p109 = por %p107, %p108
      %p110 = scmp.ne.s32.totalorder %s96, %s97
      %p111 = scmp.eq.s32.totalorder %s21, 1
      %p112 = por %p110, %p111
      %p114 = scmp.ne.s32.totalorder %s97, %s113
      %p115 = scmp.eq.s32.totalorder %s21, 0
      %p116 = por %p114, %p115
      %p117 = scmp.le.s32.totalorder 1, %s15
      %p118 = scmp.lt.s32.totalorder %s15, 3
      %p119 = pnand %p117, %p118
      %p120 = pneg %p119
      // Predicated region
      $region9: #{tpu_custom_call.1} parent=5 // pred_check
        _
      $region10: #{tpu_custom_call.1} parent=5 // pred_check_branch
        %122 = sbr.rel (%p119) target = $region12
      $region11: #{tpu_custom_call.1} parent=5 // pred_region
        %s123 = ssub.s32 %s15, 1
        // Predicated region
        $region13: #{tpu_custom_call.1} parent=11 // pred_check
          %p124 = pneg %p62
        $region14: #{tpu_custom_call.1} parent=11 // pred_check_branch
          %126 = sbr.rel (%p124) target = $region16
        $region15: #{tpu_custom_call.1} parent=11 // pred_region
          _
        $region16: #{tpu_custom_call.1} parent=11 // pred_fallthru
          _
        // Predicated region
        $region17: #{tpu_custom_call.1} parent=11 // pred_check
          %p127 = pneg %p83
        $region18: #{tpu_custom_call.1} parent=11 // pred_check_branch
          %129 = sbr.rel (%p127) target = $region20
        $region19: #{tpu_custom_call.1} parent=11 // pred_region
          _
        $region20: #{tpu_custom_call.1} parent=11 // pred_fallthru
          _
      $region12: #{tpu_custom_call.1} parent=5 // pred_fallthru
        _
      %p130 = scmp.lt.s32.totalorder %s15, 2
      // Predicated region
      $region21: #{tpu_custom_call.1} parent=5 // pred_check
        %p131 = pneg %p130
      $region22: #{tpu_custom_call.1} parent=5 // pred_check_branch
        %133 = sbr.rel (%p131) target = $region24
      $region23: #{tpu_custom_call.1} parent=5 // pred_region
        // Predicated region
        $region25: #{tpu_custom_call.1} parent=23 // pred_check
          %p134 = pneg %p35
        $region26: #{tpu_custom_call.1} parent=23 // pred_check_branch
          %136 = sbr.rel (%p134) target = $region28
        $region27: #{tpu_custom_call.1} parent=23 // pred_region
          %s137 = sand.u32 %s25, 1
          %s138 = scalar_lea.sflag [#allocation3], %s137
          %s139 = sand.u32 %s25, 1
          %s140 = smul.addr %s139, 64
          %s141 = scalar_lea.vmem [#allocation2], %s140
          %s142 = smul.u32 4, %s15
          %144 = vsyncadd %s138, 0
          %s145 = smul.addr %s142, 8
          %s146 = scalar_lea.hbm %s0, %s145
          %s147 = sshll.u32 %s146, 4
          %s148 = int_to_ptr.hbm [resolvable:$true] %s147
          %s149 = sshll.u32 %s141, 4
          %s150 = int_to_ptr.vmem [resolvable:$true] %s149
          %155 = dma.hbm_to_vmem [thread:$0]  %s148, 1024, %s150, %s138, 1024, 512, 32
        $region28: #{tpu_custom_call.1} parent=23 // pred_fallthru
          _
      $region24: #{tpu_custom_call.1} parent=5 // pred_fallthru
        _
      %p156 = scmp.le.s32.totalorder 1, %s15
      %p157 = scmp.lt.s32.totalorder %s15, 3
      %p158 = pnand %p156, %p157
      %p159 = pneg %p158
      // Predicated region
      $region29: #{tpu_custom_call.1} parent=5 // pred_check
        _
      $region30: #{tpu_custom_call.1} parent=5 // pred_check_branch
        %161 = sbr.rel (%p158) target = $region32
      $region31: #{tpu_custom_call.1} parent=5 // pred_region
        %s162 = ssub.s32 %s15, 1
        %s163 = sand.u32 %s28, 1
        %s164 = scalar_lea.sflag [#allocation3], %s163
        %s165 = sand.u32 %s28, 1
        %s166 = smul.addr %s165, 64
        %s167 = scalar_lea.vmem [#allocation2], %s166
        // Predicated region
        $region33: #{tpu_custom_call.1} parent=31 // pred_check
          %p168 = pneg %p41
        $region34: #{tpu_custom_call.1} parent=31 // pred_check_branch
          %170 = sbr.rel (%p168) target = $region36
        $region35: #{tpu_custom_call.1} parent=31 // pred_region
          %172 = dma.done %s164, 1024
        $region36: #{tpu_custom_call.1} parent=31 // pred_fallthru
          _
        %s173 = sand.u32 %s28, 1
        %s174 = scalar_lea.sflag [#allocation3], %s173
        %s175 = sand.u32 %s28, 1
        %s176 = smul.addr %s175, 64
        %s177 = scalar_lea.vmem [#allocation2], %s176
        %p178 = pneg %p41
        %p179 = pneg %p38
        %p180 = pneg %p62
        %p181 = pneg %p59
        %p182 = pneg %p83
        %p183 = pneg %p80
        %p184 = pneg %p109
        %p185 = pneg %p106
        %s186 = sand.u32 %s96, 1
        %s187 = scalar_lea.sflag [#allocation4], %s186
        %s188 = sand.u32 %s96, 1
        %s189 = smul.addr %s188, 128
        %s190 = scalar_lea.vmem [#allocation5], %s189
        %s191 = smul.u32 4, %s20
        %s192 = smul.u32 4, %s20
        %v193 = vld [vmem:[%s1] sm:$0xff]
        %v194 = vld [vmem:[%s1 + $0x8] sm:$0xff]
        %v195 = vld [vmem:[%s1 + $0x10] sm:$0xff]
        %v196 = vld [vmem:[%s1 + $0x18] sm:$0xff]
        %v197 = vld [vmem:[%s167] sm:$0xff]
        %v198 = vld [vmem:[%s167 + $0x8] sm:$0xff]
        %v199 = vld [vmem:[%s167 + $0x10] sm:$0xff]
        %v200 = vld [vmem:[%s167 + $0x18] sm:$0xff]
        %v201 = vld [vmem:[%s167 + $0x20] sm:$0xff]
        %v202 = vld [vmem:[%s167 + $0x28] sm:$0xff]
        %v203 = vld [vmem:[%s167 + $0x30] sm:$0xff]
        %v204 = vld [vmem:[%s167 + $0x38] sm:$0xff]
        %v205 = vld [vmem:[%s2] sm:$0xff]
        %v206 = vld [vmem:[%s2 + $0x8] sm:$0xff]
        %v207 = vld [vmem:[%s2 + $0x10] sm:$0xff]
        %v208 = vld [vmem:[%s2 + $0x18] sm:$0xff]
        %210 = vset.pattern.permute.xlu0 0
        %211 = vperm.xlu0 %210, %v205
        %v212 = vpop.permute.xlu0 %211
        %215 = vset.pattern.permute.xlu0 0
        %216 = vperm.xlu0 %215, %v206
        %v217 = vpop.permute.xlu0 %216
        %220 = vset.pattern.permute.xlu0 0
        %221 = vperm.xlu0 %220, %v207
        %v222 = vpop.permute.xlu0 %221
        %225 = vset.pattern.permute.xlu0 0
        %226 = vperm.xlu0 %225, %v208
        %v227 = vpop.permute.xlu0 %226
        %vm229 = vcmask 130048
        %v231 = vsel %vm229, %v193, 0
        %v234 = vsel %vm229, %v194, 0
        %v237 = vsel %vm229, %v195, 0
        %v240 = vsel %vm229, %v196, 0
        %242 = vmatpush.msra.mxu0 0.0
        %243 = vmatpush.msra.mxu0 0.0
        %244 = vmatpush.msra.mxu0 0.0
        %245 = vmatpush.msra.mxu0 0.0
        %246 = vmatpush.msra.mxu0 0.0
        %247 = vmatpush.msra.mxu0 0.0
        %248 = vmatpush.msra.mxu0 0.0
        %249 = vmatpush.msra.mxu0 0.0
        %250 = vmatpush.msra.mxu0 0.0
        %251 = vmatpush.msra.mxu0 0.0
        %252 = vmatpush.msra.mxu0 0.0
        %253 = vmatpush.msra.mxu0 0.0
        %254 = vmatpush.msra.mxu0 0.0
        %255 = vmatpush.msra.mxu0 0.0
        %256 = vmatpush.msra.mxu0 %v201
        %257 = vmatpush.msra.mxu0 %v197
        %258 = vmatmul.f32.gmra.mxu0 %v231
        %v259 = vpop.f32.mrf.mxu0
        %v260 = vadd.f32 %v212, %v259
        %261 = vmatmul.f32.gmra.mxu0 %v234
        %v262 = vpop.f32.mrf.mxu0
        %v263 = vadd.f32 %v217, %v262
        %264 = vmatmul.f32.gmra.mxu0 %v237
        %v265 = vpop.f32.mrf.mxu0
        %v266 = vadd.f32 %v222, %v265
        %267 = vmatmul.f32.gmra.mxu0 %v240
        %v268 = vpop.f32.mrf.mxu0
        %v269 = vadd.f32 %v227, %v268
        %270 = vdwg.mxu0
        %271 = vmatpush.msra.mxu0 0.0
        %272 = vmatpush.msra.mxu0 0.0
        %273 = vmatpush.msra.mxu0 0.0
        %274 = vmatpush.msra.mxu0 0.0
        %275 = vmatpush.msra.mxu0 0.0
        %276 = vmatpush.msra.mxu0 0.0
        %277 = vmatpush.msra.mxu0 0.0
        %278 = vmatpush.msra.mxu0 0.0
        %279 = vmatpush.msra.mxu0 0.0
        %280 = vmatpush.msra.mxu0 0.0
        %281 = vmatpush.msra.mxu0 0.0
        %282 = vmatpush.msra.mxu0 0.0
        %283 = vmatpush.msra.mxu0 0.0
        %284 = vmatpush.msra.mxu0 0.0
        %285 = vmatpush.msra.mxu0 %v202
        %286 = vmatpush.msra.mxu0 %v198
        %287 = vmatmul.f32.gmra.mxu0 %v231
        %v288 = vpop.f32.mrf.mxu0
        %v289 = vadd.f32 %v212, %v288
        %290 = vmatmul.f32.gmra.mxu0 %v234
        %v291 = vpop.f32.mrf.mxu0
        %v292 = vadd.f32 %v217, %v291
        %293 = vmatmul.f32.gmra.mxu0 %v237
        %v294 = vpop.f32.mrf.mxu0
        %v295 = vadd.f32 %v222, %v294
        %296 = vmatmul.f32.gmra.mxu0 %v240
        %v297 = vpop.f32.mrf.mxu0
        %v298 = vadd.f32 %v227, %v297
        %299 = vdwg.mxu0
        %300 = vmatpush.msra.mxu0 0.0
        %301 = vmatpush.msra.mxu0 0.0
        %302 = vmatpush.msra.mxu0 0.0
        %303 = vmatpush.msra.mxu0 0.0
        %304 = vmatpush.msra.mxu0 0.0
        %305 = vmatpush.msra.mxu0 0.0
        %306 = vmatpush.msra.mxu0 0.0
        %307 = vmatpush.msra.mxu0 0.0
        %308 = vmatpush.msra.mxu0 0.0
        %309 = vmatpush.msra.mxu0 0.0
        %310 = vmatpush.msra.mxu0 0.0
        %311 = vmatpush.msra.mxu0 0.0
        %312 = vmatpush.msra.mxu0 0.0
        %313 = vmatpush.msra.mxu0 0.0
        %314 = vmatpush.msra.mxu0 %v203
        %315 = vmatpush.msra.mxu0 %v199
        %316 = vmatmul.f32.gmra.mxu0 %v231
        %v317 = vpop.f32.mrf.mxu0
        %v318 = vadd.f32 %v212, %v317
        %319 = vmatmul.f32.gmra.mxu0 %v234
        %v320 = vpop.f32.mrf.mxu0
        %v321 = vadd.f32 %v217, %v320
        %322 = vmatmul.f32.gmra.mxu0 %v237
        %v323 = vpop.f32.mrf.mxu0
        %v324 = vadd.f32 %v222, %v323
        %325 = vmatmul.f32.gmra.mxu0 %v240
        %v326 = vpop.f32.mrf.mxu0
        %v327 = vadd.f32 %v227, %v326
        %328 = vdwg.mxu0
        %329 = vmatpush.msra.mxu0 0.0
        %330 = vmatpush.msra.mxu0 0.0
        %331 = vmatpush.msra.mxu0 0.0
        %332 = vmatpush.msra.mxu0 0.0
        %333 = vmatpush.msra.mxu0 0.0
        %334 = vmatpush.msra.mxu0 0.0
        %335 = vmatpush.msra.mxu0 0.0
        %336 = vmatpush.msra.mxu0 0.0
        %337 = vmatpush.msra.mxu0 0.0
        %338 = vmatpush.msra.mxu0 0.0
        %339 = vmatpush.msra.mxu0 0.0
        %340 = vmatpush.msra.mxu0 0.0
        %341 = vmatpush.msra.mxu0 0.0
        %342 = vmatpush.msra.mxu0 0.0
        %343 = vmatpush.msra.mxu0 %v204
        %344 = vmatpush.msra.mxu0 %v200
        %345 = vmatmul.f32.gmra.mxu0 %v231
        %v346 = vpop.f32.mrf.mxu0
        %v347 = vadd.f32 %v212, %v346
        %348 = vmatmul.f32.gmra.mxu0 %v234
        %v349 = vpop.f32.mrf.mxu0
        %v350 = vadd.f32 %v217, %v349
        %351 = vmatmul.f32.gmra.mxu0 %v237
        %v352 = vpop.f32.mrf.mxu0
        %v353 = vadd.f32 %v222, %v352
        %354 = vmatmul.f32.gmra.mxu0 %v240
        %v355 = vpop.f32.mrf.mxu0
        %v356 = vadd.f32 %v227, %v355
        %357 = vdwg.mxu0
        %v358 = vmax.f32 %v260, 0.0
        %v359 = vmax.f32 %v289, 0.0
        %v360 = vmax.f32 %v318, 0.0
        %v361 = vmax.f32 %v347, 0.0
        %v362 = vmax.f32 %v263, 0.0
        %v363 = vmax.f32 %v292, 0.0
        %v364 = vmax.f32 %v321, 0.0
        %v365 = vmax.f32 %v350, 0.0
        %v366 = vmax.f32 %v266, 0.0
        %v367 = vmax.f32 %v295, 0.0
        %v368 = vmax.f32 %v324, 0.0
        %v369 = vmax.f32 %v353, 0.0
        %v370 = vmax.f32 %v269, 0.0
        %v371 = vmax.f32 %v298, 0.0
        %v372 = vmax.f32 %v327, 0.0
        %v373 = vmax.f32 %v356, 0.0
        %374 = vst [vmem:[%s190] sm:$0xff] %v358
        %375 = vst [vmem:[%s190 + $0x8] sm:$0xff] %v359
        %376 = vst [vmem:[%s190 + $0x10] sm:$0xff] %v360
        %377 = vst [vmem:[%s190 + $0x18] sm:$0xff] %v361
        %378 = vst [vmem:[%s190 + $0x20] sm:$0xff] %v362
        %379 = vst [vmem:[%s190 + $0x28] sm:$0xff] %v363
        %380 = vst [vmem:[%s190 + $0x30] sm:$0xff] %v364
        %381 = vst [vmem:[%s190 + $0x38] sm:$0xff] %v365
        %382 = vst [vmem:[%s190 + $0x40] sm:$0xff] %v366
        %383 = vst [vmem:[%s190 + $0x48] sm:$0xff] %v367
        %384 = vst [vmem:[%s190 + $0x50] sm:$0xff] %v368
        %385 = vst [vmem:[%s190 + $0x58] sm:$0xff] %v369
        %386 = vst [vmem:[%s190 + $0x60] sm:$0xff] %v370
        %387 = vst [vmem:[%s190 + $0x68] sm:$0xff] %v371
        %388 = vst [vmem:[%s190 + $0x70] sm:$0xff] %v372
        %389 = vst [vmem:[%s190 + $0x78] sm:$0xff] %v373
        %s390 = sand.u32 %s96, 1
        %s391 = scalar_lea.sflag [#allocation4], %s390
        %s392 = sand.u32 %s96, 1
        %s393 = smul.addr %s392, 128
        %s394 = scalar_lea.vmem [#allocation5], %s393
        // Predicated region
        $region37: #{tpu_custom_call.1} parent=31 // pred_check
          %p395 = pneg %p106
        $region38: #{tpu_custom_call.1} parent=31 // pred_check_branch
          %397 = sbr.rel (%p395) target = $region40
        $region39: #{tpu_custom_call.1} parent=31 // pred_region
          %s398 = smul.u32 4, %s20
          %400 = vsyncadd %s391, 0
          %s401 = smul.addr %s398, 8
          %s402 = scalar_lea.hbm %s3, %s401
          %s403 = sshll.u32 %s394, 4
          %s404 = int_to_ptr.vmem [resolvable:$true] %s403
          %s405 = sshll.u32 %s402, 4
          %s406 = int_to_ptr.hbm [resolvable:$true] %s405
          %411 = dma.vmem_to_hbm [thread:$0]  %s404, 2048, %s406, %s391, 512, 1024, 32
        $region40: #{tpu_custom_call.1} parent=31 // pred_fallthru
          _
      $region32: #{tpu_custom_call.1} parent=5 // pred_fallthru
        _
      %p412 = scmp.le.s32.totalorder 2, %s15
      // Predicated region
      $region41: #{tpu_custom_call.1} parent=5 // pred_check
        %p413 = pneg %p412
      $region42: #{tpu_custom_call.1} parent=5 // pred_check_branch
        %415 = sbr.rel (%p413) target = $region44
      $region43: #{tpu_custom_call.1} parent=5 // pred_region
        %s416 = ssub.s32 %s15, 2
        // Predicated region
        $region45: #{tpu_custom_call.1} parent=43 // pred_check
          %p417 = pneg %p112
        $region46: #{tpu_custom_call.1} parent=43 // pred_check_branch
          %419 = sbr.rel (%p417) target = $region48
        $region47: #{tpu_custom_call.1} parent=43 // pred_region
          %s420 = sand.u32 %s97, 1
          %s421 = scalar_lea.sflag [#allocation4], %s420
          %s422 = sand.u32 %s97, 1
          %s423 = smul.addr %s422, 128
          %s424 = scalar_lea.vmem [#allocation5], %s423
          %426 = dma.done %s421, 2048
        $region48: #{tpu_custom_call.1} parent=43 // pred_fallthru
          _
      $region44: #{tpu_custom_call.1} parent=5 // pred_fallthru
        _
    $region6: #{tpu_custom_call.1} parent=1 // loop_footer
      %s19 = sadd.s32 1, %s15
    $region7: #{tpu_custom_call.1} parent=1 // loop_footer_branch
      %14 = sbr.rel target = $region3
    $region8: #{tpu_custom_call.1} parent=1 // loop_exit
      _
    %427 = vsyncpa [#allocation3], 1
    %s428 = scalar_lea.sflag [#allocation3], 1
    %429 = vsyncpa %s428, 1
    %430 = vsyncpa [#allocation4], 1
    %s431 = scalar_lea.sflag [#allocation4], 1
    %432 = vsyncpa %s431, 1

</llo_original>
